<compile_context>
chip_gen: v7x
topology: tpu7x:2x2x1
jax: 0.10.0
libtpu: 0.0.40
codegen_flags: <defaults>
</compile_context>

<pallas_src>
import math

import jax
import jax.numpy as jnp
from jax.experimental import pallas as pl
from jax.experimental.pallas import tpu as pltpu

# ---- shapes consistent with the module config ----
B = 2          # batch
NH = 4         # num_attention_heads
S = 8          # sequence length
HD = 8         # head dim
H = NH * HD    # hidden_size = 32  (the torch module scales by sqrt(hidden_size))


def sdpa_kernel(q_ref, k_ref, v_ref, mask_ref, out_ref, attn_ref):
    # q/k/v: (B*NH, S, HD); mask: (B, S, S).  Single invocation, all VMEM-resident.
    bn, s_len, _ = q_ref.shape
    b = mask_ref.shape[0]
    nh = bn // b

    q = q_ref[...]
    k = k_ref[...]
    v = v_ref[...]
    m = mask_ref[...]

    scale = 1.0 / math.sqrt(H)  # matches torch: / sqrt(hidden_size), NOT sqrt(head_dim)

    # Batched QK^T over the fused (batch*heads) axis -> one MXU dot_general.
    sc = jnp.einsum("bqd,bkd->bqk", q, k,
                    preferred_element_type=jnp.float32) * scale

    # Broadcast the (B, S, S) mask across heads in-kernel.  Only leading axes
    # are touched (split bn -> (B, NH)), so this is pure vreg re-indexing.
    sc4 = sc.reshape(b, nh, s_len, s_len)
    sc4 = jnp.where(m[:, None, :, :] == 0.0, -1e9, sc4)   # masked_fill(mask == 0, -1e9)
    sc = sc4.reshape(bn, s_len, s_len)

    # Numerically stable softmax with EXACT division (attn_dist is user-visible;
    # rows must sum to 1 like torch's softmax).
    sc_max = jnp.max(sc, axis=-1, keepdims=True)
    p = jnp.exp(sc - sc_max)
    a = p / jnp.sum(p, axis=-1, keepdims=True)

    # TODO(synk): training-mode nn.Dropout not implemented (would use
    # pltpu.prng_seed / pltpu.stateful_bernoulli); eval-mode identity here.
    attn_ref[...] = a
    out_ref[...] = jnp.einsum("bqk,bkd->bqd", a, v,
                              preferred_element_type=jnp.float32)


def scaled_dot_product_attention(Q, K, V, mask):
    """Q, K, V: (B, NH, S, HD); mask: (B, 1, S, S). Returns (output, attn_dist)."""
    b, nh, s, hd = Q.shape
    bn = b * nh

    # Free row-major collapses / squeeze in the wrapper (metadata only,
    # no broadcast materialization, no HBM round-trips).
    q3 = Q.reshape(bn, s, hd)
    k3 = K.reshape(bn, s, hd)
    v3 = V.reshape(bn, s, hd)
    m3 = mask.reshape(b, s, s)

    vmem = pl.BlockSpec(memory_space=pltpu.MemorySpace.VMEM)

    out3, attn3 = pl.pallas_call(
        sdpa_kernel,
        out_shape=(
            jax.ShapeDtypeStruct((bn, s, hd), jnp.float32),
            jax.ShapeDtypeStruct((bn, s, s), jnp.float32),
        ),
        in_specs=[vmem, vmem, vmem, vmem],
        out_specs=(vmem, vmem),
    )(q3, k3, v3, m3)

    return out3.reshape(b, nh, s, hd), attn3.reshape(b, nh, s, s)


# ---------------- pure-JAX reference for verification ----------------
def _ref_sdpa(Q, K, V, mask):
    hp = jax.lax.Precision.HIGHEST
    s = jnp.matmul(Q, jnp.swapaxes(K, 2, 3), precision=hp) / math.sqrt(H)
    s = jnp.where(mask == 0.0, -1e9, s)
    a = jax.nn.softmax(s, axis=-1)
    o = jnp.matmul(a, V, precision=hp)
    return o, a


if __name__ == "__main__":
    key = jax.random.PRNGKey(0)
    kq, kk, kv = jax.random.split(key, 3)

    Q = jax.random.normal(kq, (B, NH, S, HD), jnp.float32)
    K = jax.random.normal(kk, (B, NH, S, HD), jnp.float32)
    V = jax.random.normal(kv, (B, NH, S, HD), jnp.float32)

    # Deterministic padding-style mask: batch 0 fully valid, batch 1 has 2 padded keys.
    lengths = jnp.array([S, S - 2])
    valid = (jnp.arange(S)[None, :] < lengths[:, None]).astype(jnp.float32)   # (B, S)
    mask = jnp.broadcast_to(valid[:, None, None, :], (B, 1, S, S)).astype(jnp.float32)

    out, attn = scaled_dot_product_attention(Q, K, V, mask)
    out = jax.block_until_ready(out)
    attn = jax.block_until_ready(attn)

    ref_out, ref_attn = _ref_sdpa(Q, K, V, mask)

    assert out.shape == (B, NH, S, HD)
    assert attn.shape == (B, NH, S, S)

    # Exact softmax: every attention row sums to 1 (up to f32 rounding).
    assert jnp.allclose(jnp.sum(attn, axis=-1), 1.0, atol=1e-5)

    # Tolerance covers only ulp-level differences between the Pallas MXU f32
    # matmul path and XLA's HIGHEST-precision dot (no approximate softmax).
    assert jnp.allclose(out, ref_out, atol=1e-4, rtol=1e-4)
    assert jnp.allclose(attn, ref_attn, atol=1e-4, rtol=1e-4)

    print("KERNEL_OK")
</pallas_src>

<mosaic_0001>
module attributes {stable_mosaic.version = 11 : i64} {
  func.func @sdpa_kernel(%arg0: memref<8x8x8xf32, #tpu.memory_space<vmem>>, %arg1: memref<8x8x8xf32, #tpu.memory_space<vmem>>, %arg2: memref<8x8x8xf32, #tpu.memory_space<vmem>>, %arg3: memref<2x8x8xf32, #tpu.memory_space<vmem>>, %arg4: memref<8x8x8xf32, #tpu.memory_space<vmem>>, %arg5: memref<8x8x8xf32, #tpu.memory_space<vmem>>) attributes {dimension_semantics = [], scalar_prefetch = 0 : i64, scratch_operands = 0 : i64, tpu.core_type = #tpu.core_type<tc>} {
    %c0 = arith.constant 0 : index
    %c0_0 = arith.constant 0 : index
    %c0_1 = arith.constant 0 : index
    %0 = vector.load %arg0[%c0, %c0_0, %c0_1] : memref<8x8x8xf32, #tpu.memory_space<vmem>>, vector<8x8x8xf32>
    %c0_2 = arith.constant 0 : index
    %c0_3 = arith.constant 0 : index
    %c0_4 = arith.constant 0 : index
    %1 = vector.load %arg1[%c0_2, %c0_3, %c0_4] : memref<8x8x8xf32, #tpu.memory_space<vmem>>, vector<8x8x8xf32>
    %c0_5 = arith.constant 0 : index
    %c0_6 = arith.constant 0 : index
    %c0_7 = arith.constant 0 : index
    %2 = vector.load %arg2[%c0_5, %c0_6, %c0_7] : memref<8x8x8xf32, #tpu.memory_space<vmem>>, vector<8x8x8xf32>
    %c0_8 = arith.constant 0 : index
    %c0_9 = arith.constant 0 : index
    %c0_10 = arith.constant 0 : index
    %3 = vector.load %arg3[%c0_8, %c0_9, %c0_10] : memref<2x8x8xf32, #tpu.memory_space<vmem>>, vector<2x8x8xf32>
    "tpu.trace_start"() <{level = 10 : i32, message = "bqd,bkd->bqk"}> : () -> ()
    %cst = arith.constant dense<0.000000e+00> : vector<8x8x8xf32>
    %4 = tpu.matmul %0, %1, %cst {dimension_numbers = #tpu.dot_dimension_numbers<[2], [2], [1], [1], [0, 0, 0, 1, 1, 1], [0], [0]>} : vector<8x8x8xf32>, vector<8x8x8xf32>, vector<8x8x8xf32> -> vector<8x8x8xf32>
    "tpu.trace_stop"() : () -> ()
    %cst_11 = arith.constant 0.176776692 : f32
    %5 = vector.broadcast %cst_11 : f32 to vector<8x8x8xf32>
    %6 = arith.mulf %4, %5 : vector<8x8x8xf32>
    %7 = vector.shape_cast %6 : vector<8x8x8xf32> to vector<2x4x8x8xf32>
    %8 = vector.shape_cast %3 : vector<2x8x8xf32> to vector<2x1x8x8xf32>
    %cst_12 = arith.constant 0.000000e+00 : f32
    %9 = vector.broadcast %cst_12 : f32 to vector<2x1x8x8xf32>
    %10 = arith.cmpf oeq, %8, %9 : vector<2x1x8x8xf32>
    %cst_13 = arith.constant -1.000000e+09 : f32
    %11 = vector.shape_cast %10 : vector<2x1x8x8xi1> to vector<2x1x8x8xi1>
    %12 = vector.broadcast %11 : vector<2x1x8x8xi1> to vector<2x4x8x8xi1>
    %13 = vector.broadcast %cst_13 : f32 to vector<2x4x8x8xf32>
    %14 = arith.select %12, %13, %7 : vector<2x4x8x8xi1>, vector<2x4x8x8xf32>
    %15 = vector.shape_cast %14 : vector<2x4x8x8xf32> to vector<8x8x8xf32>
    %cst_14 = arith.constant dense<0xFF800000> : vector<8x8xf32>
    %16 = vector.multi_reduction <maximumf>, %15, %cst_14 [2] : vector<8x8x8xf32> to vector<8x8xf32>
    %17 = vector.shape_cast %16 : vector<8x8xf32> to vector<8x8x1xf32>
    %18 = vector.broadcast %17 : vector<8x8x1xf32> to vector<8x8x8xf32>
    %19 = arith.subf %15, %18 : vector<8x8x8xf32>
    %20 = math.exp %19 : vector<8x8x8xf32>
    %cst_15 = arith.constant dense<0.000000e+00> : vector<8x8xf32>
    %21 = vector.multi_reduction <add>, %20, %cst_15 [2] : vector<8x8x8xf32> to vector<8x8xf32>
    %22 = vector.shape_cast %21 : vector<8x8xf32> to vector<8x8x1xf32>
    %23 = vector.broadcast %22 : vector<8x8x1xf32> to vector<8x8x8xf32>
    %24 = arith.divf %20, %23 : vector<8x8x8xf32>
    %c0_16 = arith.constant 0 : index
    %c0_17 = arith.constant 0 : index
    %c0_18 = arith.constant 0 : index
    %25 = vector.load %arg5[%c0_16, %c0_17, %c0_18] : memref<8x8x8xf32, #tpu.memory_space<vmem>>, vector<8x8x8xf32>
    tpu.vector_store %arg5[%c0_16, %c0_17, %c0_18], %24 {strides = array<i32>} : memref<8x8x8xf32, #tpu.memory_space<vmem>>, vector<8x8x8xf32>,
    "tpu.trace_start"() <{level = 10 : i32, message = "bqk,bkd->bqd"}> : () -> ()
    %cst_19 = arith.constant dense<0.000000e+00> : vector<8x8x8xf32>
    %26 = tpu.matmul %24, %2, %cst_19 {dimension_numbers = #tpu.dot_dimension_numbers<[2], [1], [1], [2], [0, 0, 0, 1, 1, 2], [0], [0]>} : vector<8x8x8xf32>, vector<8x8x8xf32>, vector<8x8x8xf32> -> vector<8x8x8xf32>
    "tpu.trace_stop"() : () -> ()
    %c0_20 = arith.constant 0 : index
    %c0_21 = arith.constant 0 : index
    %c0_22 = arith.constant 0 : index
    %27 = vector.load %arg4[%c0_20, %c0_21, %c0_22] : memref<8x8x8xf32, #tpu.memory_space<vmem>>, vector<8x8x8xf32>
    tpu.vector_store %arg4[%c0_20, %c0_21, %c0_22], %26 {strides = array<i32>} : memref<8x8x8xf32, #tpu.memory_space<vmem>>, vector<8x8x8xf32>,
    return
  }
}

</mosaic_0001>

<llo_original>
// kernel: tpu_custom_call.1
$region0: #{tpu_custom_call.1}
  #allocation0 [shape = 'u32[]', space=smem, size = 0x4, offset = 0x4, fixed_abs, tag = 'smem constant byte address 0x4 - core index']
  #allocation1 [shape = 'u32[144,128]{1,0:T(1,128)}', space=vmem, size = 0x12000, scoped, tag = 'internal scratch']
  %s0 = inlined_call_operand.hbm [shape: f32[8,8,8], index: 0, kind: input, shape index: {}]
  %s1 = inlined_call_operand.hbm [shape: f32[8,8,8], index: 1, kind: input, shape index: {}]
  %s2 = inlined_call_operand.hbm [shape: f32[8,8,8], index: 2, kind: input, shape index: {}]
  %s3 = inlined_call_operand.hbm [shape: f32[2,8,8], index: 3, kind: input, shape index: {}]
  %s4 = inlined_call_operand.hbm [shape: f32[8,8,8], index: 4, kind: output, shape index: {0}]
  %s5 = inlined_call_operand.hbm [shape: f32[8,8,8], index: 5, kind: output, shape index: {1}]
  %6 = xla_tuple %s4, %s5
  %s7 = sld [smem:[#allocation0]]
  $region50: #{tpu_custom_call.1} parent=0
    _
  %s9 = ssub.s32 1, %s7
  %s10 = scalar_select 0, %s9, %s7
  $region1: #{tpu_custom_call.1} parent=0
    #allocation2 [shape = 'u8[32768]{0}', space=vmem, size = 0x8000, scoped, tag = 'input window, operand 0, single buffered']
    #allocation3 [shape = 's32[1]{0}', space=sflag, size = 0x4, scoped, tag = 'scoped memory for tpu_custom_call.1']
    #allocation4 [shape = 's32[1]{0}', space=sflag, size = 0x4, scoped, tag = 'scoped memory for tpu_custom_call.1']
    #allocation5 [shape = 'u8[32768]{0}', space=vmem, size = 0x8000, scoped, tag = 'input window, operand 1, single buffered']
    #allocation6 [shape = 's32[1]{0}', space=sflag, size = 0x4, scoped, tag = 'scoped memory for tpu_custom_call.1']
    #allocation7 [shape = 'u8[32768]{0}', space=vmem, size = 0x8000, scoped, tag = 'input window, operand 2, single buffered']
    #allocation8 [shape = 'u8[8192]{0}', space=vmem, size = 0x2000, scoped, tag = 'input window, operand 3, single buffered']
    #allocation9 [shape = 's32[1]{0}', space=sflag, size = 0x4, scoped, tag = 'scoped memory for tpu_custom_call.1']
    #allocation10 [shape = 'u8[32768]{0}', space=vmem, size = 0x8000, scoped, tag = 'output window, operand 0, single buffered']
    #allocation11 [shape = 'u8[32768]{0}', space=vmem, size = 0x8000, scoped, tag = 'output window, operand 1, single buffered']
    #allocation12 [shape = 's32[1]{0}', space=sflag, size = 0x4, scoped, tag = 'scoped memory for tpu_custom_call.1']
    %11 = vsyncpa [#allocation3], 0
    %12 = vsyncpa [#allocation6], 0
    %13 = vsyncpa [#allocation9], 0
    %14 = vsyncpa [#allocation4], 0
    %15 = vsyncpa [#allocation12], 0
    // Predicated region
    $region2: #{tpu_custom_call.1} parent=1 // pred_check
      _
    $region3: #{tpu_custom_call.1} parent=1 // pred_check_branch
      %17 = sbr.rel (0) target = $region5
    $region4: #{tpu_custom_call.1} parent=1 // pred_region
      %s19 = ssub.s32 1024, 1024
      %20 = vsyncadd [#allocation3], %s19
      %s21 = sshll.u32 [#allocation2], 4
      %s22 = int_to_ptr.vmem [resolvable:$true] %s21
      %27 = dma.hbm_to_vmem [thread:$0]  %s0, 1024, %s22, [#allocation3], 128, 128, 8
    $region5: #{tpu_custom_call.1} parent=1 // pred_fallthru
      _
    // Predicated region
    $region6: #{tpu_custom_call.1} parent=1 // pred_check
      _
    $region7: #{tpu_custom_call.1} parent=1 // pred_check_branch
      %29 = sbr.rel (0) target = $region9
    $region8: #{tpu_custom_call.1} parent=1 // pred_region
      %s31 = ssub.s32 1024, 1024
      %32 = vsyncadd [#allocation6], %s31
      %s33 = sshll.u32 [#allocation5], 4
      %s34 = int_to_ptr.vmem [resolvable:$true] %s33
      %39 = dma.hbm_to_vmem [thread:$0]  %s1, 1024, %s34, [#allocation6], 128, 128, 8
    $region9: #{tpu_custom_call.1} parent=1 // pred_fallthru
      _
    // Predicated region
    $region10: #{tpu_custom_call.1} parent=1 // pred_check
      _
    $region11: #{tpu_custom_call.1} parent=1 // pred_check_branch
      %41 = sbr.rel (0) target = $region13
    $region12: #{tpu_custom_call.1} parent=1 // pred_region
      %s43 = ssub.s32 1024, 1024
      %44 = vsyncadd [#allocation6], %s43
      %s45 = sshll.u32 [#allocation7], 4
      %s46 = int_to_ptr.vmem [resolvable:$true] %s45
      %51 = dma.hbm_to_vmem [thread:$0]  %s2, 1024, %s46, [#allocation6], 128, 128, 8
    $region13: #{tpu_custom_call.1} parent=1 // pred_fallthru
      _
    // Predicated region
    $region14: #{tpu_custom_call.1} parent=1 // pred_check
      _
    $region15: #{tpu_custom_call.1} parent=1 // pred_check_branch
      %53 = sbr.rel (0) target = $region17
    $region16: #{tpu_custom_call.1} parent=1 // pred_region
      %s55 = ssub.s32 256, 256
      %56 = vsyncadd [#allocation9], %s55
      %s57 = sshll.u32 [#allocation8], 4
      %s58 = int_to_ptr.vmem [resolvable:$true] %s57
      %63 = dma.hbm_to_vmem [thread:$0]  %s3, 256, %s58, [#allocation9], 128, 128, 8
    $region17: #{tpu_custom_call.1} parent=1 // pred_fallthru
      _
    // Predicated region
    $region18: #{tpu_custom_call.1} parent=1 // pred_check
      _
    $region19: #{tpu_custom_call.1} parent=1 // pred_check_branch
      %65 = sbr.rel (0) target = $region21
    $region20: #{tpu_custom_call.1} parent=1 // pred_region
      %66 = dma.done [#allocation3], 1024
    $region21: #{tpu_custom_call.1} parent=1 // pred_fallthru
      _
    // Predicated region
    $region22: #{tpu_custom_call.1} parent=1 // pred_check
      _
    $region23: #{tpu_custom_call.1} parent=1 // pred_check_branch
      %68 = sbr.rel (0) target = $region25
    $region24: #{tpu_custom_call.1} parent=1 // pred_region
      %69 = dma.done [#allocation6], 1024
    $region25: #{tpu_custom_call.1} parent=1 // pred_fallthru
      _
    // Predicated region
    $region26: #{tpu_custom_call.1} parent=1 // pred_check
      _
    $region27: #{tpu_custom_call.1} parent=1 // pred_check_branch
      %71 = sbr.rel (0) target = $region29
    $region28: #{tpu_custom_call.1} parent=1 // pred_region
      %72 = dma.done [#allocation6], 1024
    $region29: #{tpu_custom_call.1} parent=1 // pred_fallthru
      _
    // Predicated region
    $region30: #{tpu_custom_call.1} parent=1 // pred_check
      _
    $region31: #{tpu_custom_call.1} parent=1 // pred_check_branch
      %74 = sbr.rel (0) target = $region33
    $region32: #{tpu_custom_call.1} parent=1 // pred_region
      %75 = dma.done [#allocation9], 256
    $region33: #{tpu_custom_call.1} parent=1 // pred_fallthru
      _
    %v76 = vld [vmem:[#allocation2] sm:$0xff]
    %v77 = vld [vmem:[#allocation2 + $0x8] sm:$0xff]
    %v78 = vld [vmem:[#allocation2 + $0x10] sm:$0xff]
    %v79 = vld [vmem:[#allocation2 + $0x18] sm:$0xff]
    %v80 = vld [vmem:[#allocation2 + $0x20] sm:$0xff]
    %v81 = vld [vmem:[#allocation2 + $0x28] sm:$0xff]
    %v82 = vld [vmem:[#allocation2 + $0x30] sm:$0xff]
    %v83 = vld [vmem:[#allocation2 + $0x38] sm:$0xff]
    %v84 = vld [vmem:[#allocation5] sm:$0xff]
    %v85 = vld [vmem:[#allocation5 + $0x8] sm:$0xff]
    %v86 = vld [vmem:[#allocation5 + $0x10] sm:$0xff]
    %v87 = vld [vmem:[#allocation5 + $0x18] sm:$0xff]
    %v88 = vld [vmem:[#allocation5 + $0x20] sm:$0xff]
    %v89 = vld [vmem:[#allocation5 + $0x28] sm:$0xff]
    %v90 = vld [vmem:[#allocation5 + $0x30] sm:$0xff]
    %v91 = vld [vmem:[#allocation5 + $0x38] sm:$0xff]
    %v92 = vld [vmem:[#allocation7] sm:$0xff]
    %v93 = vld [vmem:[#allocation7 + $0x8] sm:$0xff]
    %v94 = vld [vmem:[#allocation7 + $0x10] sm:$0xff]
    %v95 = vld [vmem:[#allocation7 + $0x18] sm:$0xff]
    %v96 = vld [vmem:[#allocation7 + $0x20] sm:$0xff]
    %v97 = vld [vmem:[#allocation7 + $0x28] sm:$0xff]
    %v98 = vld [vmem:[#allocation7 + $0x30] sm:$0xff]
    %v99 = vld [vmem:[#allocation7 + $0x38] sm:$0xff]
    %v100 = vld [vmem:[#allocation8] sm:$0xff]
    %v101 = vld [vmem:[#allocation8 + $0x8] sm:$0xff]
    %vm102 = vcmask 64512
    %v104 = vsel %vm102, %v76, 0
    %v107 = vsel %vm102, %v84, 0
    %109 = vmatprep.subr.mxu0 0.0
    %110 = vmatpush1.xpose.msra.mxu0 %v107
    %111 = vmatprep.subr.mxu0 0.0
    %112 = vmatpush1.xpose.msra.mxu0 0.0
    %113 = vmatprep.subr.mxu0 0.0
    %114 = vmatpush1.xpose.msra.mxu0 0.0
    %115 = vmatprep.subr.mxu0 0.0
    %116 = vmatpush1.xpose.msra.mxu0 0.0
    %117 = vmatprep.subr.mxu0 0.0
    %118 = vmatpush1.xpose.msra.mxu0 0.0
    %119 = vmatprep.subr.mxu0 0.0
    %120 = vmatpush1.xpose.msra.mxu0 0.0
    %121 = vmatprep.subr.mxu0 0.0
    %122 = vmatpush1.xpose.msra.mxu0 0.0
    %123 = vmatprep.subr.mxu0 0.0
    %124 = vmatpush1.xpose.msra.mxu0 0.0
    %125 = vmatprep.subr.mxu0 0.0
    %126 = vmatpush1.xpose.msra.mxu0 0.0
    %127 = vmatprep.subr.mxu0 0.0
    %128 = vmatpush1.xpose.msra.mxu0 0.0
    %129 = vmatprep.subr.mxu0 0.0
    %130 = vmatpush1.xpose.msra.mxu0 0.0
    %131 = vmatprep.subr.mxu0 0.0
    %132 = vmatpush1.xpose.msra.mxu0 0.0
    %133 = vmatprep.subr.mxu0 0.0
    %134 = vmatpush1.xpose.msra.mxu0 0.0
    %135 = vmatprep.subr.mxu0 0.0
    %136 = vmatpush1.xpose.msra.mxu0 0.0
    %137 = vmatprep.subr.mxu0 0.0
    %138 = vmatpush1.xpose.msra.mxu0 0.0
    %139 = vmatprep.subr.mxu0 0.0
    %140 = vmatpush1.xpose.msra.mxu0 0.0
    %141 = vmatprep.subr.mxu0 0.0
    %142 = vmatpush1.xpose.msra.mxu0 0.0
    %143 = vmatprep.subr.mxu0 0.0
    %144 = vmatpush1.xpose.msra.mxu0 0.0
    %145 = vmatprep.subr.mxu0 0.0
    %146 = vmatpush1.xpose.msra.mxu0 0.0
    %147 = vmatprep.subr.mxu0 0.0
    %148 = vmatpush1.xpose.msra.mxu0 0.0
    %149 = vmatprep.subr.mxu0 0.0
    %150 = vmatpush1.xpose.msra.mxu0 0.0
    %151 = vmatprep.subr.mxu0 0.0
    %152 = vmatpush1.xpose.msra.mxu0 0.0
    %153 = vmatprep.subr.mxu0 0.0
    %154 = vmatpush1.xpose.msra.mxu0 0.0
    %155 = vmatprep.subr.mxu0 0.0
    %156 = vmatpush1.xpose.msra.mxu0 0.0
    %157 = vmatprep.subr.mxu0 0.0
    %158 = vmatpush1.xpose.msra.mxu0 0.0
    %159 = vmatprep.subr.mxu0 0.0
    %160 = vmatpush1.xpose.msra.mxu0 0.0
    %161 = vmatprep.subr.mxu0 0.0
    %162 = vmatpush1.xpose.msra.mxu0 0.0
    %163 = vmatprep.subr.mxu0 0.0
    %164 = vmatpush1.xpose.msra.mxu0 0.0
    %165 = vmatprep.subr.mxu0 0.0
    %166 = vmatpush1.xpose.msra.mxu0 0.0
    %167 = vmatprep.subr.mxu0 0.0
    %168 = vmatpush1.xpose.msra.mxu0 0.0
    %169 = vmatprep.subr.mxu0 0.0
    %170 = vmatpush1.xpose.msra.mxu0 0.0
    %171 = vmatprep.subr.mxu0 0.0
    %172 = vmatpush1.xpose.msra.mxu0 0.0
    %173 = vmatprep.mubr.f32.mxu0 0.0
    %174 = vmatmul.mubr.f32.gmra.mrb[0].mxu0 %v104
    %v175 = vpop.f32.mrb[0].mxu0
    %v176 = vadd.f32 0.0, %v175
    %v177 = vpop.f32.mrb[0].mxu0
    %178 = vdwg.mxu0
    %v180 = vsel %vm102, %v77, 0
    %v183 = vsel %vm102, %v85, 0
    %185 = vmatprep.subr.mxu0 0.0
    %186 = vmatpush1.xpose.msra.mxu0 %v183
    %187 = vmatprep.subr.mxu0 0.0
    %188 = vmatpush1.xpose.msra.mxu0 0.0
    %189 = vmatprep.subr.mxu0 0.0
    %190 = vmatpush1.xpose.msra.mxu0 0.0
    %191 = vmatprep.subr.mxu0 0.0
    %192 = vmatpush1.xpose.msra.mxu0 0.0
    %193 = vmatprep.subr.mxu0 0.0
    %194 = vmatpush1.xpose.msra.mxu0 0.0
    %195 = vmatprep.subr.mxu0 0.0
    %196 = vmatpush1.xpose.msra.mxu0 0.0
    %197 = vmatprep.subr.mxu0 0.0
    %198 = vmatpush1.xpose.msra.mxu0 0.0
    %199 = vmatprep.subr.mxu0 0.0
    %200 = vmatpush1.xpose.msra.mxu0 0.0
    %201 = vmatprep.subr.mxu0 0.0
    %202 = vmatpush1.xpose.msra.mxu0 0.0
    %203 = vmatprep.subr.mxu0 0.0
    %204 = vmatpush1.xpose.msra.mxu0 0.0
    %205 = vmatprep.subr.mxu0 0.0
    %206 = vmatpush1.xpose.msra.mxu0 0.0
    %207 = vmatprep.subr.mxu0 0.0
    %208 = vmatpush1.xpose.msra.mxu0 0.0
    %209 = vmatprep.subr.mxu0 0.0
    %210 = vmatpush1.xpose.msra.mxu0 0.0
    %211 = vmatprep.subr.mxu0 0.0
    %212 = vmatpush1.xpose.msra.mxu0 0.0
    %213 = vmatprep.subr.mxu0 0.0
    %214 = vmatpush1.xpose.msra.mxu0 0.0
    %215 = vmatprep.subr.mxu0 0.0
    %216 = vmatpush1.xpose.msra.mxu0 0.0
    %217 = vmatprep.subr.mxu0 0.0
    %218 = vmatpush1.xpose.msra.mxu0 0.0
    %219 = vmatprep.subr.mxu0 0.0
    %220 = vmatpush1.xpose.msra.mxu0 0.0
    %221 = vmatprep.subr.mxu0 0.0
    %222 = vmatpush1.xpose.msra.mxu0 0.0
    %223 = vmatprep.subr.mxu0 0.0
    %224 = vmatpush1.xpose.msra.mxu0 0.0
    %225 = vmatprep.subr.mxu0 0.0
    %226 = vmatpush1.xpose.msra.mxu0 0.0
    %227 = vmatprep.subr.mxu0 0.0
    %228 = vmatpush1.xpose.msra.mxu0 0.0
    %229 = vmatprep.subr.mxu0 0.0
    %230 = vmatpush1.xpose.msra.mxu0 0.0
    %231 = vmatprep.subr.mxu0 0.0
    %232 = vmatpush1.xpose.msra.mxu0 0.0
    %233 = vmatprep.subr.mxu0 0.0
    %234 = vmatpush1.xpose.msra.mxu0 0.0
    %235 = vmatprep.subr.mxu0 0.0
    %236 = vmatpush1.xpose.msra.mxu0 0.0
    %237 = vmatprep.subr.mxu0 0.0
    %238 = vmatpush1.xpose.msra.mxu0 0.0
    %239 = vmatprep.subr.mxu0 0.0
    %240 = vmatpush1.xpose.msra.mxu0 0.0
    %241 = vmatprep.subr.mxu0 0.0
    %242 = vmatpush1.xpose.msra.mxu0 0.0
    %243 = vmatprep.subr.mxu0 0.0
    %244 = vmatpush1.xpose.msra.mxu0 0.0
    %245 = vmatprep.subr.mxu0 0.0
    %246 = vmatpush1.xpose.msra.mxu0 0.0
    %247 = vmatprep.subr.mxu0 0.0
    %248 = vmatpush1.xpose.msra.mxu0 0.0
    %249 = vmatprep.mubr.f32.mxu0 0.0
    %250 = vmatmul.mubr.f32.gmra.mrb[0].mxu0 %v180
    %v251 = vpop.f32.mrb[0].mxu0
    %v252 = vadd.f32 0.0, %v251
    %v253 = vpop.f32.mrb[0].mxu0
    %254 = vdwg.mxu0
    %v256 = vsel %vm102, %v78, 0
    %v259 = vsel %vm102, %v86, 0
    %261 = vmatprep.subr.mxu0 0.0
    %262 = vmatpush1.xpose.msra.mxu0 %v259
    %263 = vmatprep.subr.mxu0 0.0
    %264 = vmatpush1.xpose.msra.mxu0 0.0
    %265 = vmatprep.subr.mxu0 0.0
    %266 = vmatpush1.xpose.msra.mxu0 0.0
    %267 = vmatprep.subr.mxu0 0.0
    %268 = vmatpush1.xpose.msra.mxu0 0.0
    %269 = vmatprep.subr.mxu0 0.0
    %270 = vmatpush1.xpose.msra.mxu0 0.0
    %271 = vmatprep.subr.mxu0 0.0
    %272 = vmatpush1.xpose.msra.mxu0 0.0
    %273 = vmatprep.subr.mxu0 0.0
    %274 = vmatpush1.xpose.msra.mxu0 0.0
    %275 = vmatprep.subr.mxu0 0.0
    %276 = vmatpush1.xpose.msra.mxu0 0.0
    %277 = vmatprep.subr.mxu0 0.0
    %278 = vmatpush1.xpose.msra.mxu0 0.0
    %279 = vmatprep.subr.mxu0 0.0
    %280 = vmatpush1.xpose.msra.mxu0 0.0
    %281 = vmatprep.subr.mxu0 0.0
    %282 = vmatpush1.xpose.msra.mxu0 0.0
    %283 = vmatprep.subr.mxu0 0.0
    %284 = vmatpush1.xpose.msra.mxu0 0.0
    %285 = vmatprep.subr.mxu0 0.0
    %286 = vmatpush1.xpose.msra.mxu0 0.0
    %287 = vmatprep.subr.mxu0 0.0
    %288 = vmatpush1.xpose.msra.mxu0 0.0
    %289 = vmatprep.subr.mxu0 0.0
    %290 = vmatpush1.xpose.msra.mxu0 0.0
    %291 = vmatprep.subr.mxu0 0.0
    %292 = vmatpush1.xpose.msra.mxu0 0.0
    %293 = vmatprep.subr.mxu0 0.0
    %294 = vmatpush1.xpose.msra.mxu0 0.0
    %295 = vmatprep.subr.mxu0 0.0
    %296 = vmatpush1.xpose.msra.mxu0 0.0
    %297 = vmatprep.subr.mxu0 0.0
    %298 = vmatpush1.xpose.msra.mxu0 0.0
    %299 = vmatprep.subr.mxu0 0.0
    %300 = vmatpush1.xpose.msra.mxu0 0.0
    %301 = vmatprep.subr.mxu0 0.0
    %302 = vmatpush1.xpose.msra.mxu0 0.0
    %303 = vmatprep.subr.mxu0 0.0
    %304 = vmatpush1.xpose.msra.mxu0 0.0
    %305 = vmatprep.subr.mxu0 0.0
    %306 = vmatpush1.xpose.msra.mxu0 0.0
    %307 = vmatprep.subr.mxu0 0.0
    %308 = vmatpush1.xpose.msra.mxu0 0.0
    %309 = vmatprep.subr.mxu0 0.0
    %310 = vmatpush1.xpose.msra.mxu0 0.0
    %311 = vmatprep.subr.mxu0 0.0
    %312 = vmatpush1.xpose.msra.mxu0 0.0
    %313 = vmatprep.subr.mxu0 0.0
    %314 = vmatpush1.xpose.msra.mxu0 0.0
    %315 = vmatprep.subr.mxu0 0.0
    %316 = vmatpush1.xpose.msra.mxu0 0.0
    %317 = vmatprep.subr.mxu0 0.0
    %318 = vmatpush1.xpose.msra.mxu0 0.0
    %319 = vmatprep.subr.mxu0 0.0
    %320 = vmatpush1.xpose.msra.mxu0 0.0
    %321 = vmatprep.subr.mxu0 0.0
    %322 = vmatpush1.xpose.msra.mxu0 0.0
    %323 = vmatprep.subr.mxu0 0.0
    %324 = vmatpush1.xpose.msra.mxu0 0.0
    %325 = vmatprep.mubr.f32.mxu0 0.0
    %326 = vmatmul.mubr.f32.gmra.mrb[0].mxu0 %v256
    %v327 = vpop.f32.mrb[0].mxu0
    %v328 = vadd.f32 0.0, %v327
    %v329 = vpop.f32.mrb[0].mxu0
    %330 = vdwg.mxu0
    %v332 = vsel %vm102, %v79, 0
    %v335 = vsel %vm102, %v87, 0
    %337 = vmatprep.subr.mxu0 0.0
    %338 = vmatpush1.xpose.msra.mxu0 %v335
    %339 = vmatprep.subr.mxu0 0.0
    %340 = vmatpush1.xpose.msra.mxu0 0.0
    %341 = vmatprep.subr.mxu0 0.0
    %342 = vmatpush1.xpose.msra.mxu0 0.0
    %343 = vmatprep.subr.mxu0 0.0
    %344 = vmatpush1.xpose.msra.mxu0 0.0
    %345 = vmatprep.subr.mxu0 0.0
    %346 = vmatpush1.xpose.msra.mxu0 0.0
    %347 = vmatprep.subr.mxu0 0.0
    %348 = vmatpush1.xpose.msra.mxu0 0.0
    %349 = vmatprep.subr.mxu0 0.0
    %350 = vmatpush1.xpose.msra.mxu0 0.0
    %351 = vmatprep.subr.mxu0 0.0
    %352 = vmatpush1.xpose.msra.mxu0 0.0
    %353 = vmatprep.subr.mxu0 0.0
    %354 = vmatpush1.xpose.msra.mxu0 0.0
    %355 = vmatprep.subr.mxu0 0.0
    %356 = vmatpush1.xpose.msra.mxu0 0.0
    %357 = vmatprep.subr.mxu0 0.0
    %358 = vmatpush1.xpose.msra.mxu0 0.0
    %359 = vmatprep.subr.mxu0 0.0
    %360 = vmatpush1.xpose.msra.mxu0 0.0
    %361 = vmatprep.subr.mxu0 0.0
    %362 = vmatpush1.xpose.msra.mxu0 0.0
    %363 = vmatprep.subr.mxu0 0.0
    %364 = vmatpush1.xpose.msra.mxu0 0.0
    %365 = vmatprep.subr.mxu0 0.0
    %366 = vmatpush1.xpose.msra.mxu0 0.0
    %367 = vmatprep.subr.mxu0 0.0
    %368 = vmatpush1.xpose.msra.mxu0 0.0
    %369 = vmatprep.subr.mxu0 0.0
    %370 = vmatpush1.xpose.msra.mxu0 0.0
    %371 = vmatprep.subr.mxu0 0.0
    %372 = vmatpush1.xpose.msra.mxu0 0.0
    %373 = vmatprep.subr.mxu0 0.0
    %374 = vmatpush1.xpose.msra.mxu0 0.0
    %375 = vmatprep.subr.mxu0 0.0
    %376 = vmatpush1.xpose.msra.mxu0 0.0
    %377 = vmatprep.subr.mxu0 0.0
    %378 = vmatpush1.xpose.msra.mxu0 0.0
    %379 = vmatprep.subr.mxu0 0.0
    %380 = vmatpush1.xpose.msra.mxu0 0.0
    %381 = vmatprep.subr.mxu0 0.0
    %382 = vmatpush1.xpose.msra.mxu0 0.0
    %383 = vmatprep.subr.mxu0 0.0
    %384 = vmatpush1.xpose.msra.mxu0 0.0
    %385 = vmatprep.subr.mxu0 0.0
    %386 = vmatpush1.xpose.msra.mxu0 0.0
    %387 = vmatprep.subr.mxu0 0.0
    %388 = vmatpush1.xpose.msra.mxu0 0.0
    %389 = vmatprep.subr.mxu0 0.0
    %390 = vmatpush1.xpose.msra.mxu0 0.0
    %391 = vmatprep.subr.mxu0 0.0
    %392 = vmatpush1.xpose.msra.mxu0 0.0
    %393 = vmatprep.subr.mxu0 0.0
    %394 = vmatpush1.xpose.msra.mxu0 0.0
    %395 = vmatprep.subr.mxu0 0.0
    %396 = vmatpush1.xpose.msra.mxu0 0.0
    %397 = vmatprep.subr.mxu0 0.0
    %398 = vmatpush1.xpose.msra.mxu0 0.0
    %399 = vmatprep.subr.mxu0 0.0
    %400 = vmatpush1.xpose.msra.mxu0 0.0
    %401 = vmatprep.mubr.f32.mxu0 0.0
    %402 = vmatmul.mubr.f32.gmra.mrb[0].mxu0 %v332
    %v403 = vpop.f32.mrb[0].mxu0
    %v404 = vadd.f32 0.0, %v403
    %v405 = vpop.f32.mrb[0].mxu0
    %406 = vdwg.mxu0
    %v408 = vsel %vm102, %v80, 0
    %v411 = vsel %vm102, %v88, 0
    %413 = vmatprep.subr.mxu0 0.0
    %414 = vmatpush1.xpose.msra.mxu0 %v411
    %415 = vmatprep.subr.mxu0 0.0
    %416 = vmatpush1.xpose.msra.mxu0 0.0
    %417 = vmatprep.subr.mxu0 0.0
    %418 = vmatpush1.xpose.msra.mxu0 0.0
    %419 = vmatprep.subr.mxu0 0.0
    %420 = vmatpush1.xpose.msra.mxu0 0.0
    %421 = vmatprep.subr.mxu0 0.0
    %422 = vmatpush1.xpose.msra.mxu0 0.0
    %423 = vmatprep.subr.mxu0 0.0
    %424 = vmatpush1.xpose.msra.mxu0 0.0
    %425 = vmatprep.subr.mxu0 0.0
    %426 = vmatpush1.xpose.msra.mxu0 0.0
    %427 = vmatprep.subr.mxu0 0.0
    %428 = vmatpush1.xpose.msra.mxu0 0.0
    %429 = vmatprep.subr.mxu0 0.0
    %430 = vmatpush1.xpose.msra.mxu0 0.0
    %431 = vmatprep.subr.mxu0 0.0
    %432 = vmatpush1.xpose.msra.mxu0 0.0
    %433 = vmatprep.subr.mxu0 0.0
    %434 = vmatpush1.xpose.msra.mxu0 0.0
    %435 = vmatprep.subr.mxu0 0.0
    %436 = vmatpush1.xpose.msra.mxu0 0.0
    %437 = vmatprep.subr.mxu0 0.0
    %438 = vmatpush1.xpose.msra.mxu0 0.0
    %439 = vmatprep.subr.mxu0 0.0
    %440 = vmatpush1.xpose.msra.mxu0 0.0
    %441 = vmatprep.subr.mxu0 0.0
    %442 = vmatpush1.xpose.msra.mxu0 0.0
    %443 = vmatprep.subr.mxu0 0.0
    %444 = vmatpush1.xpose.msra.mxu0 0.0
    %445 = vmatprep.subr.mxu0 0.0
    %446 = vmatpush1.xpose.msra.mxu0 0.0
    %447 = vmatprep.subr.mxu0 0.0
    %448 = vmatpush1.xpose.msra.mxu0 0.0
    %449 = vmatprep.subr.mxu0 0.0
    %450 = vmatpush1.xpose.msra.mxu0 0.0
    %451 = vmatprep.subr.mxu0 0.0
    %452 = vmatpush1.xpose.msra.mxu0 0.0
    %453 = vmatprep.subr.mxu0 0.0
    %454 = vmatpush1.xpose.msra.mxu0 0.0
    %455 = vmatprep.subr.mxu0 0.0
    %456 = vmatpush1.xpose.msra.mxu0 0.0
    %457 = vmatprep.subr.mxu0 0.0
    %458 = vmatpush1.xpose.msra.mxu0 0.0
    %459 = vmatprep.subr.mxu0 0.0
    %460 = vmatpush1.xpose.msra.mxu0 0.0
    %461 = vmatprep.subr.mxu0 0.0
    %462 = vmatpush1.xpose.msra.mxu0 0.0
    %463 = vmatprep.subr.mxu0 0.0
    %464 = vmatpush1.xpose.msra.mxu0 0.0
    %465 = vmatprep.subr.mxu0 0.0
    %466 = vmatpush1.xpose.msra.mxu0 0.0
    %467 = vmatprep.subr.mxu0 0.0
    %468 = vmatpush1.xpose.msra.mxu0 0.0
    %469 = vmatprep.subr.mxu0 0.0
    %470 = vmatpush1.xpose.msra.mxu0 0.0
    %471 = vmatprep.subr.mxu0 0.0
    %472 = vmatpush1.xpose.msra.mxu0 0.0
    %473 = vmatprep.subr.mxu0 0.0
    %474 = vmatpush1.xpose.msra.mxu0 0.0
    %475 = vmatprep.subr.mxu0 0.0
    %476 = vmatpush1.xpose.msra.mxu0 0.0
    %477 = vmatprep.mubr.f32.mxu0 0.0
    %478 = vmatmul.mubr.f32.gmra.mrb[0].mxu0 %v408
    %v479 = vpop.f32.mrb[0].mxu0
    %v480 = vadd.f32 0.0, %v479
    %v481 = vpop.f32.mrb[0].mxu0
    %482 = vdwg.mxu0
    %v484 = vsel %vm102, %v81, 0
    %v487 = vsel %vm102, %v89, 0
    %489 = vmatprep.subr.mxu0 0.0
    %490 = vmatpush1.xpose.msra.mxu0 %v487
    %491 = vmatprep.subr.mxu0 0.0
    %492 = vmatpush1.xpose.msra.mxu0 0.0
    %493 = vmatprep.subr.mxu0 0.0
    %494 = vmatpush1.xpose.msra.mxu0 0.0
    %495 = vmatprep.subr.mxu0 0.0
    %496 = vmatpush1.xpose.msra.mxu0 0.0
    %497 = vmatprep.subr.mxu0 0.0
    %498 = vmatpush1.xpose.msra.mxu0 0.0
    %499 = vmatprep.subr.mxu0 0.0
    %500 = vmatpush1.xpose.msra.mxu0 0.0
    %501 = vmatprep.subr.mxu0 0.0
    %502 = vmatpush1.xpose.msra.mxu0 0.0
    %503 = vmatprep.subr.mxu0 0.0
    %504 = vmatpush1.xpose.msra.mxu0 0.0
    %505 = vmatprep.subr.mxu0 0.0
    %506 = vmatpush1.xpose.msra.mxu0 0.0
    %507 = vmatprep.subr.mxu0 0.0
    %508 = vmatpush1.xpose.msra.mxu0 0.0
    %509 = vmatprep.subr.mxu0 0.0
    %510 = vmatpush1.xpose.msra.mxu0 0.0
    %511 = vmatprep.subr.mxu0 0.0
    %512 = vmatpush1.xpose.msra.mxu0 0.0
    %513 = vmatprep.subr.mxu0 0.0
    %514 = vmatpush1.xpose.msra.mxu0 0.0
    %515 = vmatprep.subr.mxu0 0.0
    %516 = vmatpush1.xpose.msra.mxu0 0.0
    %517 = vmatprep.subr.mxu0 0.0
    %518 = vmatpush1.xpose.msra.mxu0 0.0
    %519 = vmatprep.subr.mxu0 0.0
    %520 = vmatpush1.xpose.msra.mxu0 0.0
    %521 = vmatprep.subr.mxu0 0.0
    %522 = vmatpush1.xpose.msra.mxu0 0.0
    %523 = vmatprep.subr.mxu0 0.0
    %524 = vmatpush1.xpose.msra.mxu0 0.0
    %525 = vmatprep.subr.mxu0 0.0
    %526 = vmatpush1.xpose.msra.mxu0 0.0
    %527 = vmatprep.subr.mxu0 0.0
    %528 = vmatpush1.xpose.msra.mxu0 0.0
    %529 = vmatprep.subr.mxu0 0.0
    %530 = vmatpush1.xpose.msra.mxu0 0.0
    %531 = vmatprep.subr.mxu0 0.0
    %532 = vmatpush1.xpose.msra.mxu0 0.0
    %533 = vmatprep.subr.mxu0 0.0
    %534 = vmatpush1.xpose.msra.mxu0 0.0
    %535 = vmatprep.subr.mxu0 0.0
    %536 = vmatpush1.xpose.msra.mxu0 0.0
    %537 = vmatprep.subr.mxu0 0.0
    %538 = vmatpush1.xpose.msra.mxu0 0.0
    %539 = vmatprep.subr.mxu0 0.0
    %540 = vmatpush1.xpose.msra.mxu0 0.0
    %541 = vmatprep.subr.mxu0 0.0
    %542 = vmatpush1.xpose.msra.mxu0 0.0
    %543 = vmatprep.subr.mxu0 0.0
    %544 = vmatpush1.xpose.msra.mxu0 0.0
    %545 = vmatprep.subr.mxu0 0.0
    %546 = vmatpush1.xpose.msra.mxu0 0.0
    %547 = vmatprep.subr.mxu0 0.0
    %548 = vmatpush1.xpose.msra.mxu0 0.0
    %549 = vmatprep.subr.mxu0 0.0
    %550 = vmatpush1.xpose.msra.mxu0 0.0
    %551 = vmatprep.subr.mxu0 0.0
    %552 = vmatpush1.xpose.msra.mxu0 0.0
    %553 = vmatprep.mubr.f32.mxu0 0.0
    %554 = vmatmul.mubr.f32.gmra.mrb[0].mxu0 %v484
    %v555 = vpop.f32.mrb[0].mxu0
    %v556 = vadd.f32 0.0, %v555
    %v557 = vpop.f32.mrb[0].mxu0
    %558 = vdwg.mxu0
    %v560 = vsel %vm102, %v82, 0
    %v563 = vsel %vm102, %v90, 0
    %565 = vmatprep.subr.mxu0 0.0
    %566 = vmatpush1.xpose.msra.mxu0 %v563
    %567 = vmatprep.subr.mxu0 0.0
    %568 = vmatpush1.xpose.msra.mxu0 0.0
    %569 = vmatprep.subr.mxu0 0.0
    %570 = vmatpush1.xpose.msra.mxu0 0.0
    %571 = vmatprep.subr.mxu0 0.0
    %572 = vmatpush1.xpose.msra.mxu0 0.0
    %573 = vmatprep.subr.mxu0 0.0
    %574 = vmatpush1.xpose.msra.mxu0 0.0
    %575 = vmatprep.subr.mxu0 0.0
    %576 = vmatpush1.xpose.msra.mxu0 0.0
    %577 = vmatprep.subr.mxu0 0.0
    %578 = vmatpush1.xpose.msra.mxu0 0.0
    %579 = vmatprep.subr.mxu0 0.0
    %580 = vmatpush1.xpose.msra.mxu0 0.0
    %581 = vmatprep.subr.mxu0 0.0
    %582 = vmatpush1.xpose.msra.mxu0 0.0
    %583 = vmatprep.subr.mxu0 0.0
    %584 = vmatpush1.xpose.msra.mxu0 0.0
    %585 = vmatprep.subr.mxu0 0.0
    %586 = vmatpush1.xpose.msra.mxu0 0.0
    %587 = vmatprep.subr.mxu0 0.0
    %588 = vmatpush1.xpose.msra.mxu0 0.0
    %589 = vmatprep.subr.mxu0 0.0
    %590 = vmatpush1.xpose.msra.mxu0 0.0
    %591 = vmatprep.subr.mxu0 0.0
    %592 = vmatpush1.xpose.msra.mxu0 0.0
    %593 = vmatprep.subr.mxu0 0.0
    %594 = vmatpush1.xpose.msra.mxu0 0.0
    %595 = vmatprep.subr.mxu0 0.0
    %596 = vmatpush1.xpose.msra.mxu0 0.0
    %597 = vmatprep.subr.mxu0 0.0
    %598 = vmatpush1.xpose.msra.mxu0 0.0
    %599 = vmatprep.subr.mxu0 0.0
    %600 = vmatpush1.xpose.msra.mxu0 0.0
    %601 = vmatprep.subr.mxu0 0.0
    %602 = vmatpush1.xpose.msra.mxu0 0.0
    %603 = vmatprep.subr.mxu0 0.0
    %604 = vmatpush1.xpose.msra.mxu0 0.0
    %605 = vmatprep.subr.mxu0 0.0
    %606 = vmatpush1.xpose.msra.mxu0 0.0
    %607 = vmatprep.subr.mxu0 0.0
    %608 = vmatpush1.xpose.msra.mxu0 0.0
    %609 = vmatprep.subr.mxu0 0.0
    %610 = vmatpush1.xpose.msra.mxu0 0.0
    %611 = vmatprep.subr.mxu0 0.0
    %612 = vmatpush1.xpose.msra.mxu0 0.0
    %613 = vmatprep.subr.mxu0 0.0
    %614 = vmatpush1.xpose.msra.mxu0 0.0
    %615 = vmatprep.subr.mxu0 0.0
    %616 = vmatpush1.xpose.msra.mxu0 0.0
    %617 = vmatprep.subr.mxu0 0.0
    %618 = vmatpush1.xpose.msra.mxu0 0.0
    %619 = vmatprep.subr.mxu0 0.0
    %620 = vmatpush1.xpose.msra.mxu0 0.0
    %621 = vmatprep.subr.mxu0 0.0
    %622 = vmatpush1.xpose.msra.mxu0 0.0
    %623 = vmatprep.subr.mxu0 0.0
    %624 = vmatpush1.xpose.msra.mxu0 0.0
    %625 = vmatprep.subr.mxu0 0.0
    %626 = vmatpush1.xpose.msra.mxu0 0.0
    %627 = vmatprep.subr.mxu0 0.0
    %628 = vmatpush1.xpose.msra.mxu0 0.0
    %629 = vmatprep.mubr.f32.mxu0 0.0
    %630 = vmatmul.mubr.f32.gmra.mrb[0].mxu0 %v560
    %v631 = vpop.f32.mrb[0].mxu0
    %v632 = vadd.f32 0.0, %v631
    %v633 = vpop.f32.mrb[0].mxu0
    %634 = vdwg.mxu0
    %v636 = vsel %vm102, %v83, 0
    %v639 = vsel %vm102, %v91, 0
    %641 = vmatprep.subr.mxu0 0.0
    %642 = vmatpush1.xpose.msra.mxu0 %v639
    %643 = vmatprep.subr.mxu0 0.0
    %644 = vmatpush1.xpose.msra.mxu0 0.0
    %645 = vmatprep.subr.mxu0 0.0
    %646 = vmatpush1.xpose.msra.mxu0 0.0
    %647 = vmatprep.subr.mxu0 0.0
    %648 = vmatpush1.xpose.msra.mxu0 0.0
    %649 = vmatprep.subr.mxu0 0.0
    %650 = vmatpush1.xpose.msra.mxu0 0.0
    %651 = vmatprep.subr.mxu0 0.0
    %652 = vmatpush1.xpose.msra.mxu0 0.0
    %653 = vmatprep.subr.mxu0 0.0
    %654 = vmatpush1.xpose.msra.mxu0 0.0
    %655 = vmatprep.subr.mxu0 0.0
    %656 = vmatpush1.xpose.msra.mxu0 0.0
    %657 = vmatprep.subr.mxu0 0.0
    %658 = vmatpush1.xpose.msra.mxu0 0.0
    %659 = vmatprep.subr.mxu0 0.0
    %660 = vmatpush1.xpose.msra.mxu0 0.0
    %661 = vmatprep.subr.mxu0 0.0
    %662 = vmatpush1.xpose.msra.mxu0 0.0
    %663 = vmatprep.subr.mxu0 0.0
    %664 = vmatpush1.xpose.msra.mxu0 0.0
    %665 = vmatprep.subr.mxu0 0.0
    %666 = vmatpush1.xpose.msra.mxu0 0.0
    %667 = vmatprep.subr.mxu0 0.0
    %668 = vmatpush1.xpose.msra.mxu0 0.0
    %669 = vmatprep.subr.mxu0 0.0
    %670 = vmatpush1.xpose.msra.mxu0 0.0
    %671 = vmatprep.subr.mxu0 0.0
    %672 = vmatpush1.xpose.msra.mxu0 0.0
    %673 = vmatprep.subr.mxu0 0.0
    %674 = vmatpush1.xpose.msra.mxu0 0.0
    %675 = vmatprep.subr.mxu0 0.0
    %676 = vmatpush1.xpose.msra.mxu0 0.0
    %677 = vmatprep.subr.mxu0 0.0
    %678 = vmatpush1.xpose.msra.mxu0 0.0
    %679 = vmatprep.subr.mxu0 0.0
    %680 = vmatpush1.xpose.msra.mxu0 0.0
    %681 = vmatprep.subr.mxu0 0.0
    %682 = vmatpush1.xpose.msra.mxu0 0.0
    %683 = vmatprep.subr.mxu0 0.0
    %684 = vmatpush1.xpose.msra.mxu0 0.0
    %685 = vmatprep.subr.mxu0 0.0
    %686 = vmatpush1.xpose.msra.mxu0 0.0
    %687 = vmatprep.subr.mxu0 0.0
    %688 = vmatpush1.xpose.msra.mxu0 0.0
    %689 = vmatprep.subr.mxu0 0.0
    %690 = vmatpush1.xpose.msra.mxu0 0.0
    %691 = vmatprep.subr.mxu0 0.0
    %692 = vmatpush1.xpose.msra.mxu0 0.0
    %693 = vmatprep.subr.mxu0 0.0
    %694 = vmatpush1.xpose.msra.mxu0 0.0
    %695 = vmatprep.subr.mxu0 0.0
    %696 = vmatpush1.xpose.msra.mxu0 0.0
    %697 = vmatprep.subr.mxu0 0.0
    %698 = vmatpush1.xpose.msra.mxu0 0.0
    %699 = vmatprep.subr.mxu0 0.0
    %700 = vmatpush1.xpose.msra.mxu0 0.0
    %701 = vmatprep.subr.mxu0 0.0
    %702 = vmatpush1.xpose.msra.mxu0 0.0
    %703 = vmatprep.subr.mxu0 0.0
    %704 = vmatpush1.xpose.msra.mxu0 0.0
    %705 = vmatprep.mubr.f32.mxu0 0.0
    %706 = vmatmul.mubr.f32.gmra.mrb[0].mxu0 %v636
    %v707 = vpop.f32.mrb[0].mxu0
    %v708 = vadd.f32 0.0, %v707
    %v709 = vpop.f32.mrb[0].mxu0
    %710 = vdwg.mxu0
    %v711 = vmul.f32 %v176, 0.17677669
    %v712 = vmul.f32 %v252, 0.17677669
    %v713 = vmul.f32 %v328, 0.17677669
    %v714 = vmul.f32 %v404, 0.17677669
    %v715 = vmul.f32 %v480, 0.17677669
    %v716 = vmul.f32 %v556, 0.17677669
    %v717 = vmul.f32 %v632, 0.17677669
    %v718 = vmul.f32 %v708, 0.17677669
    %vm719 = vcmp.eq.f32.partialorder %v100, 0.0
    %vm720 = vcmp.eq.f32.partialorder %v101, 0.0
    %v721 = vsel %vm719, 1, 0
    %v722 = vsel %vm720, 1, 0
    %vm723 = vcmp.eq.s32.totalorder %v721, 1
    %vm724 = vcmp.eq.s32.totalorder %v722, 1
    %v725 = vsel %vm723, -1e+09, %v711
    %v726 = vsel %vm723, -1e+09, %v712
    %v727 = vsel %vm723, -1e+09, %v713
    %v728 = vsel %vm723, -1e+09, %v714
    %v729 = vsel %vm724, -1e+09, %v715
    %v730 = vsel %vm724, -1e+09, %v716
    %v731 = vsel %vm724, -1e+09, %v717
    %v732 = vsel %vm724, -1e+09, %v718
    %v733 = vsel %vm102, %v725, -inf
    %734 = vmax.xlane.f32.xlu0 %v733
    %v735 = vpop.xlane.xlu0 %734
    %v736 = vsel %vm102, %v726, -inf
    %737 = vmax.xlane.f32.xlu0 %v736
    %v738 = vpop.xlane.xlu0 %737
    %v739 = vsel %vm102, %v727, -inf
    %740 = vmax.xlane.f32.xlu0 %v739
    %v741 = vpop.xlane.xlu0 %740
    %v742 = vsel %vm102, %v728, -inf
    %743 = vmax.xlane.f32.xlu0 %v742
    %v744 = vpop.xlane.xlu0 %743
    %v745 = vsel %vm102, %v729, -inf
    %746 = vmax.xlane.f32.xlu0 %v745
    %v747 = vpop.xlane.xlu0 %746
    %v748 = vsel %vm102, %v730, -inf
    %749 = vmax.xlane.f32.xlu0 %v748
    %v750 = vpop.xlane.xlu0 %749
    %v751 = vsel %vm102, %v731, -inf
    %752 = vmax.xlane.f32.xlu0 %v751
    %v753 = vpop.xlane.xlu0 %752
    %v754 = vsel %vm102, %v732, -inf
    %755 = vmax.xlane.f32.xlu0 %v754
    %v756 = vpop.xlane.xlu0 %755
    %v757 = vsub.f32 %v725, %v735
    %v758 = vsub.f32 %v726, %v738
    %v759 = vsub.f32 %v727, %v741
    %v760 = vsub.f32 %v728, %v744
    %v761 = vsub.f32 %v729, %v747
    %v762 = vsub.f32 %v730, %v750
    %v763 = vsub.f32 %v731, %v753
    %v764 = vsub.f32 %v732, %v756
    %v765 = vmul.f32 %v757, 1.442695
    %v766 = vpow.pop %v765
    %v767 = vmul.f32 %v758, 1.442695
    %v768 = vpow.pop %v767
    %v769 = vmul.f32 %v759, 1.442695
    %v770 = vpow.pop %v769
    %v771 = vmul.f32 %v760, 1.442695
    %v772 = vpow.pop %v771
    %v773 = vmul.f32 %v761, 1.442695
    %v774 = vpow.pop %v773
    %v775 = vmul.f32 %v762, 1.442695
    %v776 = vpow.pop %v775
    %v777 = vmul.f32 %v763, 1.442695
    %v778 = vpow.pop %v777
    %v779 = vmul.f32 %v764, 1.442695
    %v780 = vpow.pop %v779
    %v781 = vsel %vm102, %v766, 0.0
    %782 = vadd.xlane.f32.xlu0 %v781
    %v783 = vpop.xlane.xlu0 %782
    %v784 = vsel %vm102, %v768, 0.0
    %785 = vadd.xlane.f32.xlu0 %v784
    %v786 = vpop.xlane.xlu0 %785
    %v787 = vsel %vm102, %v770, 0.0
    %788 = vadd.xlane.f32.xlu0 %v787
    %v789 = vpop.xlane.xlu0 %788
    %v790 = vsel %vm102, %v772, 0.0
    %791 = vadd.xlane.f32.xlu0 %v790
    %v792 = vpop.xlane.xlu0 %791
    %v793 = vsel %vm102, %v774, 0.0
    %794 = vadd.xlane.f32.xlu0 %v793
    %v795 = vpop.xlane.xlu0 %794
    %v796 = vsel %vm102, %v776, 0.0
    %797 = vadd.xlane.f32.xlu0 %v796
    %v798 = vpop.xlane.xlu0 %797
    %v799 = vsel %vm102, %v778, 0.0
    %800 = vadd.xlane.f32.xlu0 %v799
    %v801 = vpop.xlane.xlu0 %800
    %v802 = vsel %vm102, %v780, 0.0
    %803 = vadd.xlane.f32.xlu0 %v802
    %v804 = vpop.xlane.xlu0 %803
    %v805 = vrcp.pop %v783
    %v806 = vmul.f32 %v766, %v805
    %v807 = vrcp.pop %v786
    %v808 = vmul.f32 %v768, %v807
    %v809 = vrcp.pop %v789
    %v810 = vmul.f32 %v770, %v809
    %v811 = vrcp.pop %v792
    %v812 = vmul.f32 %v772, %v811
    %v813 = vrcp.pop %v795
    %v814 = vmul.f32 %v774, %v813
    %v815 = vrcp.pop %v798
    %v816 = vmul.f32 %v776, %v815
    %v817 = vrcp.pop %v801
    %v818 = vmul.f32 %v778, %v817
    %v819 = vrcp.pop %v804
    %v820 = vmul.f32 %v780, %v819
    %821 = vst.msk [vmem:[#allocation11] sm:$0xff] %vm102, %v806
    %822 = vst.msk [vmem:[#allocation11 + $0x8] sm:$0xff] %vm102, %v808
    %823 = vst.msk [vmem:[#allocation11 + $0x10] sm:$0xff] %vm102, %v810
    %824 = vst.msk [vmem:[#allocation11 + $0x18] sm:$0xff] %vm102, %v812
    %825 = vst.msk [vmem:[#allocation11 + $0x20] sm:$0xff] %vm102, %v814
    %826 = vst.msk [vmem:[#allocation11 + $0x28] sm:$0xff] %vm102, %v816
    %827 = vst.msk [vmem:[#allocation11 + $0x30] sm:$0xff] %vm102, %v818
    %828 = vst.msk [vmem:[#allocation11 + $0x38] sm:$0xff] %vm102, %v820
    %v830 = vsel %vm102, %v806, 0
    %832 = vmatprep.subr.mxu0 0.0
    %833 = vmatpush1.msra.mxu0 %v92
    %834 = vmatprep.subr.mxu0 0.0
    %835 = vmatpush1.msra.mxu0 0.0
    %836 = vmatprep.subr.mxu0 0.0
    %837 = vmatpush1.msra.mxu0 0.0
    %838 = vmatprep.subr.mxu0 0.0
    %839 = vmatpush1.msra.mxu0 0.0
    %840 = vmatprep.subr.mxu0 0.0
    %841 = vmatpush1.msra.mxu0 0.0
    %842 = vmatprep.subr.mxu0 0.0
    %843 = vmatpush1.msra.mxu0 0.0
    %844 = vmatprep.subr.mxu0 0.0
    %845 = vmatpush1.msra.mxu0 0.0
    %846 = vmatprep.subr.mxu0 0.0
    %847 = vmatpush1.msra.mxu0 0.0
    %848 = vmatprep.subr.mxu0 0.0
    %849 = vmatpush1.msra.mxu0 0.0
    %850 = vmatprep.subr.mxu0 0.0
    %851 = vmatpush1.msra.mxu0 0.0
    %852 = vmatprep.subr.mxu0 0.0
    %853 = vmatpush1.msra.mxu0 0.0
    %854 = vmatprep.subr.mxu0 0.0
    %855 = vmatpush1.msra.mxu0 0.0
    %856 = vmatprep.subr.mxu0 0.0
    %857 = vmatpush1.msra.mxu0 0.0
    %858 = vmatprep.subr.mxu0 0.0
    %859 = vmatpush1.msra.mxu0 0.0
    %860 = vmatprep.subr.mxu0 0.0
    %861 = vmatpush1.msra.mxu0 0.0
    %862 = vmatprep.subr.mxu0 0.0
    %863 = vmatpush1.msra.mxu0 0.0
    %864 = vmatprep.subr.mxu0 0.0
    %865 = vmatpush1.msra.mxu0 0.0
    %866 = vmatprep.subr.mxu0 0.0
    %867 = vmatpush1.msra.mxu0 0.0
    %868 = vmatprep.subr.mxu0 0.0
    %869 = vmatpush1.msra.mxu0 0.0
    %870 = vmatprep.subr.mxu0 0.0
    %871 = vmatpush1.msra.mxu0 0.0
    %872 = vmatprep.subr.mxu0 0.0
    %873 = vmatpush1.msra.mxu0 0.0
    %874 = vmatprep.subr.mxu0 0.0
    %875 = vmatpush1.msra.mxu0 0.0
    %876 = vmatprep.subr.mxu0 0.0
    %877 = vmatpush1.msra.mxu0 0.0
    %878 = vmatprep.subr.mxu0 0.0
    %879 = vmatpush1.msra.mxu0 0.0
    %880 = vmatprep.subr.mxu0 0.0
    %881 = vmatpush1.msra.mxu0 0.0
    %882 = vmatprep.subr.mxu0 0.0
    %883 = vmatpush1.msra.mxu0 0.0
    %884 = vmatprep.subr.mxu0 0.0
    %885 = vmatpush1.msra.mxu0 0.0
    %886 = vmatprep.subr.mxu0 0.0
    %887 = vmatpush1.msra.mxu0 0.0
    %888 = vmatprep.subr.mxu0 0.0
    %889 = vmatpush1.msra.mxu0 0.0
    %890 = vmatprep.subr.mxu0 0.0
    %891 = vmatpush1.msra.mxu0 0.0
    %892 = vmatprep.subr.mxu0 0.0
    %893 = vmatpush1.msra.mxu0 0.0
    %894 = vmatprep.subr.mxu0 0.0
    %895 = vmatpush1.msra.mxu0 0.0
    %896 = vmatprep.mubr.f32.mxu0 0.0
    %897 = vmatmul.mubr.f32.gmra.mrb[0].mxu0 %v830
    %v898 = vpop.f32.mrb[0].mxu0
    %v899 = vadd.f32 0.0, %v898
    %v900 = vpop.f32.mrb[0].mxu0
    %901 = vdwg.mxu0
    %v903 = vsel %vm102, %v808, 0
    %905 = vmatprep.subr.mxu0 0.0
    %906 = vmatpush1.msra.mxu0 %v93
    %907 = vmatprep.subr.mxu0 0.0
    %908 = vmatpush1.msra.mxu0 0.0
    %909 = vmatprep.subr.mxu0 0.0
    %910 = vmatpush1.msra.mxu0 0.0
    %911 = vmatprep.subr.mxu0 0.0
    %912 = vmatpush1.msra.mxu0 0.0
    %913 = vmatprep.subr.mxu0 0.0
    %914 = vmatpush1.msra.mxu0 0.0
    %915 = vmatprep.subr.mxu0 0.0
    %916 = vmatpush1.msra.mxu0 0.0
    %917 = vmatprep.subr.mxu0 0.0
    %918 = vmatpush1.msra.mxu0 0.0
    %919 = vmatprep.subr.mxu0 0.0
    %920 = vmatpush1.msra.mxu0 0.0
    %921 = vmatprep.subr.mxu0 0.0
    %922 = vmatpush1.msra.mxu0 0.0
    %923 = vmatprep.subr.mxu0 0.0
    %924 = vmatpush1.msra.mxu0 0.0
    %925 = vmatprep.subr.mxu0 0.0
    %926 = vmatpush1.msra.mxu0 0.0
    %927 = vmatprep.subr.mxu0 0.0
    %928 = vmatpush1.msra.mxu0 0.0
    %929 = vmatprep.subr.mxu0 0.0
    %930 = vmatpush1.msra.mxu0 0.0
    %931 = vmatprep.subr.mxu0 0.0
    %932 = vmatpush1.msra.mxu0 0.0
    %933 = vmatprep.subr.mxu0 0.0
    %934 = vmatpush1.msra.mxu0 0.0
    %935 = vmatprep.subr.mxu0 0.0
    %936 = vmatpush1.msra.mxu0 0.0
    %937 = vmatprep.subr.mxu0 0.0
    %938 = vmatpush1.msra.mxu0 0.0
    %939 = vmatprep.subr.mxu0 0.0
    %940 = vmatpush1.msra.mxu0 0.0
    %941 = vmatprep.subr.mxu0 0.0
    %942 = vmatpush1.msra.mxu0 0.0
    %943 = vmatprep.subr.mxu0 0.0
    %944 = vmatpush1.msra.mxu0 0.0
    %945 = vmatprep.subr.mxu0 0.0
    %946 = vmatpush1.msra.mxu0 0.0
    %947 = vmatprep.subr.mxu0 0.0
    %948 = vmatpush1.msra.mxu0 0.0
    %949 = vmatprep.subr.mxu0 0.0
    %950 = vmatpush1.msra.mxu0 0.0
    %951 = vmatprep.subr.mxu0 0.0
    %952 = vmatpush1.msra.mxu0 0.0
    %953 = vmatprep.subr.mxu0 0.0
    %954 = vmatpush1.msra.mxu0 0.0
    %955 = vmatprep.subr.mxu0 0.0
    %956 = vmatpush1.msra.mxu0 0.0
    %957 = vmatprep.subr.mxu0 0.0
    %958 = vmatpush1.msra.mxu0 0.0
    %959 = vmatprep.subr.mxu0 0.0
    %960 = vmatpush1.msra.mxu0 0.0
    %961 = vmatprep.subr.mxu0 0.0
    %962 = vmatpush1.msra.mxu0 0.0
    %963 = vmatprep.subr.mxu0 0.0
    %964 = vmatpush1.msra.mxu0 0.0
    %965 = vmatprep.subr.mxu0 0.0
    %966 = vmatpush1.msra.mxu0 0.0
    %967 = vmatprep.subr.mxu0 0.0
    %968 = vmatpush1.msra.mxu0 0.0
    %969 = vmatprep.mubr.f32.mxu0 0.0
    %970 = vmatmul.mubr.f32.gmra.mrb[0].mxu0 %v903
    %v971 = vpop.f32.mrb[0].mxu0
    %v972 = vadd.f32 0.0, %v971
    %v973 = vpop.f32.mrb[0].mxu0
    %974 = vdwg.mxu0
    %v976 = vsel %vm102, %v810, 0
    %978 = vmatprep.subr.mxu0 0.0
    %979 = vmatpush1.msra.mxu0 %v94
    %980 = vmatprep.subr.mxu0 0.0
    %981 = vmatpush1.msra.mxu0 0.0
    %982 = vmatprep.subr.mxu0 0.0
    %983 = vmatpush1.msra.mxu0 0.0
    %984 = vmatprep.subr.mxu0 0.0
    %985 = vmatpush1.msra.mxu0 0.0
    %986 = vmatprep.subr.mxu0 0.0
    %987 = vmatpush1.msra.mxu0 0.0
    %988 = vmatprep.subr.mxu0 0.0
    %989 = vmatpush1.msra.mxu0 0.0
    %990 = vmatprep.subr.mxu0 0.0
    %991 = vmatpush1.msra.mxu0 0.0
    %992 = vmatprep.subr.mxu0 0.0
    %993 = vmatpush1.msra.mxu0 0.0
    %994 = vmatprep.subr.mxu0 0.0
    %995 = vmatpush1.msra.mxu0 0.0
    %996 = vmatprep.subr.mxu0 0.0
    %997 = vmatpush1.msra.mxu0 0.0
    %998 = vmatprep.subr.mxu0 0.0
    %999 = vmatpush1.msra.mxu0 0.0
    %1000 = vmatprep.subr.mxu0 0.0
    %1001 = vmatpush1.msra.mxu0 0.0
    %1002 = vmatprep.subr.mxu0 0.0
    %1003 = vmatpush1.msra.mxu0 0.0
    %1004 = vmatprep.subr.mxu0 0.0
    %1005 = vmatpush1.msra.mxu0 0.0
    %1006 = vmatprep.subr.mxu0 0.0
    %1007 = vmatpush1.msra.mxu0 0.0
    %1008 = vmatprep.subr.mxu0 0.0
    %1009 = vmatpush1.msra.mxu0 0.0
    %1010 = vmatprep.subr.mxu0 0.0
    %1011 = vmatpush1.msra.mxu0 0.0
    %1012 = vmatprep.subr.mxu0 0.0
    %1013 = vmatpush1.msra.mxu0 0.0
    %1014 = vmatprep.subr.mxu0 0.0
    %1015 = vmatpush1.msra.mxu0 0.0
    %1016 = vmatprep.subr.mxu0 0.0
    %1017 = vmatpush1.msra.mxu0 0.0
    %1018 = vmatprep.subr.mxu0 0.0
    %1019 = vmatpush1.msra.mxu0 0.0
    %1020 = vmatprep.subr.mxu0 0.0
    %1021 = vmatpush1.msra.mxu0 0.0
    %1022 = vmatprep.subr.mxu0 0.0
    %1023 = vmatpush1.msra.mxu0 0.0
    %1024 = vmatprep.subr.mxu0 0.0
    %1025 = vmatpush1.msra.mxu0 0.0
    %1026 = vmatprep.subr.mxu0 0.0
    %1027 = vmatpush1.msra.mxu0 0.0
    %1028 = vmatprep.subr.mxu0 0.0
    %1029 = vmatpush1.msra.mxu0 0.0
    %1030 = vmatprep.subr.mxu0 0.0
    %1031 = vmatpush1.msra.mxu0 0.0
    %1032 = vmatprep.subr.mxu0 0.0
    %1033 = vmatpush1.msra.mxu0 0.0
    %1034 = vmatprep.subr.mxu0 0.0
    %1035 = vmatpush1.msra.mxu0 0.0
    %1036 = vmatprep.subr.mxu0 0.0
    %1037 = vmatpush1.msra.mxu0 0.0
    %1038 = vmatprep.subr.mxu0 0.0
    %1039 = vmatpush1.msra.mxu0 0.0
    %1040 = vmatprep.subr.mxu0 0.0
    %1041 = vmatpush1.msra.mxu0 0.0
    %1042 = vmatprep.mubr.f32.mxu0 0.0
    %1043 = vmatmul.mubr.f32.gmra.mrb[0].mxu0 %v976
    %v1044 = vpop.f32.mrb[0].mxu0
    %v1045 = vadd.f32 0.0, %v1044
    %v1046 = vpop.f32.mrb[0].mxu0
    %1047 = vdwg.mxu0
    %v1049 = vsel %vm102, %v812, 0
    %1051 = vmatprep.subr.mxu0 0.0
    %1052 = vmatpush1.msra.mxu0 %v95
    %1053 = vmatprep.subr.mxu0 0.0
    %1054 = vmatpush1.msra.mxu0 0.0
    %1055 = vmatprep.subr.mxu0 0.0
    %1056 = vmatpush1.msra.mxu0 0.0
    %1057 = vmatprep.subr.mxu0 0.0
    %1058 = vmatpush1.msra.mxu0 0.0
    %1059 = vmatprep.subr.mxu0 0.0
    %1060 = vmatpush1.msra.mxu0 0.0
    %1061 = vmatprep.subr.mxu0 0.0
    %1062 = vmatpush1.msra.mxu0 0.0
    %1063 = vmatprep.subr.mxu0 0.0
    %1064 = vmatpush1.msra.mxu0 0.0
    %1065 = vmatprep.subr.mxu0 0.0
    %1066 = vmatpush1.msra.mxu0 0.0
    %1067 = vmatprep.subr.mxu0 0.0
    %1068 = vmatpush1.msra.mxu0 0.0
    %1069 = vmatprep.subr.mxu0 0.0
    %1070 = vmatpush1.msra.mxu0 0.0
    %1071 = vmatprep.subr.mxu0 0.0
    %1072 = vmatpush1.msra.mxu0 0.0
    %1073 = vmatprep.subr.mxu0 0.0
    %1074 = vmatpush1.msra.mxu0 0.0
    %1075 = vmatprep.subr.mxu0 0.0
    %1076 = vmatpush1.msra.mxu0 0.0
    %1077 = vmatprep.subr.mxu0 0.0
    %1078 = vmatpush1.msra.mxu0 0.0
    %1079 = vmatprep.subr.mxu0 0.0
    %1080 = vmatpush1.msra.mxu0 0.0
    %1081 = vmatprep.subr.mxu0 0.0
    %1082 = vmatpush1.msra.mxu0 0.0
    %1083 = vmatprep.subr.mxu0 0.0
    %1084 = vmatpush1.msra.mxu0 0.0
    %1085 = vmatprep.subr.mxu0 0.0
    %1086 = vmatpush1.msra.mxu0 0.0
    %1087 = vmatprep.subr.mxu0 0.0
    %1088 = vmatpush1.msra.mxu0 0.0
    %1089 = vmatprep.subr.mxu0 0.0
    %1090 = vmatpush1.msra.mxu0 0.0
    %1091 = vmatprep.subr.mxu0 0.0
    %1092 = vmatpush1.msra.mxu0 0.0
    %1093 = vmatprep.subr.mxu0 0.0
    %1094 = vmatpush1.msra.mxu0 0.0
    %1095 = vmatprep.subr.mxu0 0.0
    %1096 = vmatpush1.msra.mxu0 0.0
    %1097 = vmatprep.subr.mxu0 0.0
    %1098 = vmatpush1.msra.mxu0 0.0
    %1099 = vmatprep.subr.mxu0 0.0
    %1100 = vmatpush1.msra.mxu0 0.0
    %1101 = vmatprep.subr.mxu0 0.0
    %1102 = vmatpush1.msra.mxu0 0.0
    %1103 = vmatprep.subr.mxu0 0.0
    %1104 = vmatpush1.msra.mxu0 0.0
    %1105 = vmatprep.subr.mxu0 0.0
    %1106 = vmatpush1.msra.mxu0 0.0
    %1107 = vmatprep.subr.mxu0 0.0
    %1108 = vmatpush1.msra.mxu0 0.0
    %1109 = vmatprep.subr.mxu0 0.0
    %1110 = vmatpush1.msra.mxu0 0.0
    %1111 = vmatprep.subr.mxu0 0.0
    %1112 = vmatpush1.msra.mxu0 0.0
    %1113 = vmatprep.subr.mxu0 0.0
    %1114 = vmatpush1.msra.mxu0 0.0
    %1115 = vmatprep.mubr.f32.mxu0 0.0
    %1116 = vmatmul.mubr.f32.gmra.mrb[0].mxu0 %v1049
    %v1117 = vpop.f32.mrb[0].mxu0
    %v1118 = vadd.f32 0.0, %v1117
    %v1119 = vpop.f32.mrb[0].mxu0
    %1120 = vdwg.mxu0
    %v1122 = vsel %vm102, %v814, 0
    %1124 = vmatprep.subr.mxu0 0.0
    %1125 = vmatpush1.msra.mxu0 %v96
    %1126 = vmatprep.subr.mxu0 0.0
    %1127 = vmatpush1.msra.mxu0 0.0
    %1128 = vmatprep.subr.mxu0 0.0
    %1129 = vmatpush1.msra.mxu0 0.0
    %1130 = vmatprep.subr.mxu0 0.0
    %1131 = vmatpush1.msra.mxu0 0.0
    %1132 = vmatprep.subr.mxu0 0.0
    %1133 = vmatpush1.msra.mxu0 0.0
    %1134 = vmatprep.subr.mxu0 0.0
    %1135 = vmatpush1.msra.mxu0 0.0
    %1136 = vmatprep.subr.mxu0 0.0
    %1137 = vmatpush1.msra.mxu0 0.0
    %1138 = vmatprep.subr.mxu0 0.0
    %1139 = vmatpush1.msra.mxu0 0.0
    %1140 = vmatprep.subr.mxu0 0.0
    %1141 = vmatpush1.msra.mxu0 0.0
    %1142 = vmatprep.subr.mxu0 0.0
    %1143 = vmatpush1.msra.mxu0 0.0
    %1144 = vmatprep.subr.mxu0 0.0
    %1145 = vmatpush1.msra.mxu0 0.0
    %1146 = vmatprep.subr.mxu0 0.0
    %1147 = vmatpush1.msra.mxu0 0.0
    %1148 = vmatprep.subr.mxu0 0.0
    %1149 = vmatpush1.msra.mxu0 0.0
    %1150 = vmatprep.subr.mxu0 0.0
    %1151 = vmatpush1.msra.mxu0 0.0
    %1152 = vmatprep.subr.mxu0 0.0
    %1153 = vmatpush1.msra.mxu0 0.0
    %1154 = vmatprep.subr.mxu0 0.0
    %1155 = vmatpush1.msra.mxu0 0.0
    %1156 = vmatprep.subr.mxu0 0.0
    %1157 = vmatpush1.msra.mxu0 0.0
    %1158 = vmatprep.subr.mxu0 0.0
    %1159 = vmatpush1.msra.mxu0 0.0
    %1160 = vmatprep.subr.mxu0 0.0
    %1161 = vmatpush1.msra.mxu0 0.0
    %1162 = vmatprep.subr.mxu0 0.0
    %1163 = vmatpush1.msra.mxu0 0.0
    %1164 = vmatprep.subr.mxu0 0.0
    %1165 = vmatpush1.msra.mxu0 0.0
    %1166 = vmatprep.subr.mxu0 0.0
    %1167 = vmatpush1.msra.mxu0 0.0
    %1168 = vmatprep.subr.mxu0 0.0
    %1169 = vmatpush1.msra.mxu0 0.0
    %1170 = vmatprep.subr.mxu0 0.0
    %1171 = vmatpush1.msra.mxu0 0.0
    %1172 = vmatprep.subr.mxu0 0.0
    %1173 = vmatpush1.msra.mxu0 0.0
    %1174 = vmatprep.subr.mxu0 0.0
    %1175 = vmatpush1.msra.mxu0 0.0
    %1176 = vmatprep.subr.mxu0 0.0
    %1177 = vmatpush1.msra.mxu0 0.0
    %1178 = vmatprep.subr.mxu0 0.0
    %1179 = vmatpush1.msra.mxu0 0.0
    %1180 = vmatprep.subr.mxu0 0.0
    %1181 = vmatpush1.msra.mxu0 0.0
    %1182 = vmatprep.subr.mxu0 0.0
    %1183 = vmatpush1.msra.mxu0 0.0
    %1184 = vmatprep.subr.mxu0 0.0
    %1185 = vmatpush1.msra.mxu0 0.0
    %1186 = vmatprep.subr.mxu0 0.0
    %1187 = vmatpush1.msra.mxu0 0.0
    %1188 = vmatprep.mubr.f32.mxu0 0.0
    %1189 = vmatmul.mubr.f32.gmra.mrb[0].mxu0 %v1122
    %v1190 = vpop.f32.mrb[0].mxu0
    %v1191 = vadd.f32 0.0, %v1190
    %v1192 = vpop.f32.mrb[0].mxu0
    %1193 = vdwg.mxu0
    %v1195 = vsel %vm102, %v816, 0
    %1197 = vmatprep.subr.mxu0 0.0
    %1198 = vmatpush1.msra.mxu0 %v97
    %1199 = vmatprep.subr.mxu0 0.0
    %1200 = vmatpush1.msra.mxu0 0.0
    %1201 = vmatprep.subr.mxu0 0.0
    %1202 = vmatpush1.msra.mxu0 0.0
    %1203 = vmatprep.subr.mxu0 0.0
    %1204 = vmatpush1.msra.mxu0 0.0
    %1205 = vmatprep.subr.mxu0 0.0
    %1206 = vmatpush1.msra.mxu0 0.0
    %1207 = vmatprep.subr.mxu0 0.0
    %1208 = vmatpush1.msra.mxu0 0.0
    %1209 = vmatprep.subr.mxu0 0.0
    %1210 = vmatpush1.msra.mxu0 0.0
    %1211 = vmatprep.subr.mxu0 0.0
    %1212 = vmatpush1.msra.mxu0 0.0
    %1213 = vmatprep.subr.mxu0 0.0
    %1214 = vmatpush1.msra.mxu0 0.0
    %1215 = vmatprep.subr.mxu0 0.0
    %1216 = vmatpush1.msra.mxu0 0.0
    %1217 = vmatprep.subr.mxu0 0.0
    %1218 = vmatpush1.msra.mxu0 0.0
    %1219 = vmatprep.subr.mxu0 0.0
    %1220 = vmatpush1.msra.mxu0 0.0
    %1221 = vmatprep.subr.mxu0 0.0
    %1222 = vmatpush1.msra.mxu0 0.0
    %1223 = vmatprep.subr.mxu0 0.0
    %1224 = vmatpush1.msra.mxu0 0.0
    %1225 = vmatprep.subr.mxu0 0.0
    %1226 = vmatpush1.msra.mxu0 0.0
    %1227 = vmatprep.subr.mxu0 0.0
    %1228 = vmatpush1.msra.mxu0 0.0
    %1229 = vmatprep.subr.mxu0 0.0
    %1230 = vmatpush1.msra.mxu0 0.0
    %1231 = vmatprep.subr.mxu0 0.0
    %1232 = vmatpush1.msra.mxu0 0.0
    %1233 = vmatprep.subr.mxu0 0.0
    %1234 = vmatpush1.msra.mxu0 0.0
    %1235 = vmatprep.subr.mxu0 0.0
    %1236 = vmatpush1.msra.mxu0 0.0
    %1237 = vmatprep.subr.mxu0 0.0
    %1238 = vmatpush1.msra.mxu0 0.0
    %1239 = vmatprep.subr.mxu0 0.0
    %1240 = vmatpush1.msra.mxu0 0.0
    %1241 = vmatprep.subr.mxu0 0.0
    %1242 = vmatpush1.msra.mxu0 0.0
    %1243 = vmatprep.subr.mxu0 0.0
    %1244 = vmatpush1.msra.mxu0 0.0
    %1245 = vmatprep.subr.mxu0 0.0
    %1246 = vmatpush1.msra.mxu0 0.0
    %1247 = vmatprep.subr.mxu0 0.0
    %1248 = vmatpush1.msra.mxu0 0.0
    %1249 = vmatprep.subr.mxu0 0.0
    %1250 = vmatpush1.msra.mxu0 0.0
    %1251 = vmatprep.subr.mxu0 0.0
    %1252 = vmatpush1.msra.mxu0 0.0
    %1253 = vmatprep.subr.mxu0 0.0
    %1254 = vmatpush1.msra.mxu0 0.0
    %1255 = vmatprep.subr.mxu0 0.0
    %1256 = vmatpush1.msra.mxu0 0.0
    %1257 = vmatprep.subr.mxu0 0.0
    %1258 = vmatpush1.msra.mxu0 0.0
    %1259 = vmatprep.subr.mxu0 0.0
    %1260 = vmatpush1.msra.mxu0 0.0
    %1261 = vmatprep.mubr.f32.mxu0 0.0
    %1262 = vmatmul.mubr.f32.gmra.mrb[0].mxu0 %v1195
    %v1263 = vpop.f32.mrb[0].mxu0
    %v1264 = vadd.f32 0.0, %v1263
    %v1265 = vpop.f32.mrb[0].mxu0
    %1266 = vdwg.mxu0
    %v1268 = vsel %vm102, %v818, 0
    %1270 = vmatprep.subr.mxu0 0.0
    %1271 = vmatpush1.msra.mxu0 %v98
    %1272 = vmatprep.subr.mxu0 0.0
    %1273 = vmatpush1.msra.mxu0 0.0
    %1274 = vmatprep.subr.mxu0 0.0
    %1275 = vmatpush1.msra.mxu0 0.0
    %1276 = vmatprep.subr.mxu0 0.0
    %1277 = vmatpush1.msra.mxu0 0.0
    %1278 = vmatprep.subr.mxu0 0.0
    %1279 = vmatpush1.msra.mxu0 0.0
    %1280 = vmatprep.subr.mxu0 0.0
    %1281 = vmatpush1.msra.mxu0 0.0
    %1282 = vmatprep.subr.mxu0 0.0
    %1283 = vmatpush1.msra.mxu0 0.0
    %1284 = vmatprep.subr.mxu0 0.0
    %1285 = vmatpush1.msra.mxu0 0.0
    %1286 = vmatprep.subr.mxu0 0.0
    %1287 = vmatpush1.msra.mxu0 0.0
    %1288 = vmatprep.subr.mxu0 0.0
    %1289 = vmatpush1.msra.mxu0 0.0
    %1290 = vmatprep.subr.mxu0 0.0
    %1291 = vmatpush1.msra.mxu0 0.0
    %1292 = vmatprep.subr.mxu0 0.0
    %1293 = vmatpush1.msra.mxu0 0.0
    %1294 = vmatprep.subr.mxu0 0.0
    %1295 = vmatpush1.msra.mxu0 0.0
    %1296 = vmatprep.subr.mxu0 0.0
    %1297 = vmatpush1.msra.mxu0 0.0
    %1298 = vmatprep.subr.mxu0 0.0
    %1299 = vmatpush1.msra.mxu0 0.0
    %1300 = vmatprep.subr.mxu0 0.0
    %1301 = vmatpush1.msra.mxu0 0.0
    %1302 = vmatprep.subr.mxu0 0.0
    %1303 = vmatpush1.msra.mxu0 0.0
    %1304 = vmatprep.subr.mxu0 0.0
    %1305 = vmatpush1.msra.mxu0 0.0
    %1306 = vmatprep.subr.mxu0 0.0
    %1307 = vmatpush1.msra.mxu0 0.0
    %1308 = vmatprep.subr.mxu0 0.0
    %1309 = vmatpush1.msra.mxu0 0.0
    %1310 = vmatprep.subr.mxu0 0.0
    %1311 = vmatpush1.msra.mxu0 0.0
    %1312 = vmatprep.subr.mxu0 0.0
    %1313 = vmatpush1.msra.mxu0 0.0
    %1314 = vmatprep.subr.mxu0 0.0
    %1315 = vmatpush1.msra.mxu0 0.0
    %1316 = vmatprep.subr.mxu0 0.0
    %1317 = vmatpush1.msra.mxu0 0.0
    %1318 = vmatprep.subr.mxu0 0.0
    %1319 = vmatpush1.msra.mxu0 0.0
    %1320 = vmatprep.subr.mxu0 0.0
    %1321 = vmatpush1.msra.mxu0 0.0
    %1322 = vmatprep.subr.mxu0 0.0
    %1323 = vmatpush1.msra.mxu0 0.0
    %1324 = vmatprep.subr.mxu0 0.0
    %1325 = vmatpush1.msra.mxu0 0.0
    %1326 = vmatprep.subr.mxu0 0.0
    %1327 = vmatpush1.msra.mxu0 0.0
    %1328 = vmatprep.subr.mxu0 0.0
    %1329 = vmatpush1.msra.mxu0 0.0
    %1330 = vmatprep.subr.mxu0 0.0
    %1331 = vmatpush1.msra.mxu0 0.0
    %1332 = vmatprep.subr.mxu0 0.0
    %1333 = vmatpush1.msra.mxu0 0.0
    %1334 = vmatprep.mubr.f32.mxu0 0.0
    %1335 = vmatmul.mubr.f32.gmra.mrb[0].mxu0 %v1268
    %v1336 = vpop.f32.mrb[0].mxu0
    %v1337 = vadd.f32 0.0, %v1336
    %v1338 = vpop.f32.mrb[0].mxu0
    %1339 = vdwg.mxu0
    %v1341 = vsel %vm102, %v820, 0
    %1343 = vmatprep.subr.mxu0 0.0
    %1344 = vmatpush1.msra.mxu0 %v99
    %1345 = vmatprep.subr.mxu0 0.0
    %1346 = vmatpush1.msra.mxu0 0.0
    %1347 = vmatprep.subr.mxu0 0.0
    %1348 = vmatpush1.msra.mxu0 0.0
    %1349 = vmatprep.subr.mxu0 0.0
    %1350 = vmatpush1.msra.mxu0 0.0
    %1351 = vmatprep.subr.mxu0 0.0
    %1352 = vmatpush1.msra.mxu0 0.0
    %1353 = vmatprep.subr.mxu0 0.0
    %1354 = vmatpush1.msra.mxu0 0.0
    %1355 = vmatprep.subr.mxu0 0.0
    %1356 = vmatpush1.msra.mxu0 0.0
    %1357 = vmatprep.subr.mxu0 0.0
    %1358 = vmatpush1.msra.mxu0 0.0
    %1359 = vmatprep.subr.mxu0 0.0
    %1360 = vmatpush1.msra.mxu0 0.0
    %1361 = vmatprep.subr.mxu0 0.0
    %1362 = vmatpush1.msra.mxu0 0.0
    %1363 = vmatprep.subr.mxu0 0.0
    %1364 = vmatpush1.msra.mxu0 0.0
    %1365 = vmatprep.subr.mxu0 0.0
    %1366 = vmatpush1.msra.mxu0 0.0
    %1367 = vmatprep.subr.mxu0 0.0
    %1368 = vmatpush1.msra.mxu0 0.0
    %1369 = vmatprep.subr.mxu0 0.0
    %1370 = vmatpush1.msra.mxu0 0.0
    %1371 = vmatprep.subr.mxu0 0.0
    %1372 = vmatpush1.msra.mxu0 0.0
    %1373 = vmatprep.subr.mxu0 0.0
    %1374 = vmatpush1.msra.mxu0 0.0
    %1375 = vmatprep.subr.mxu0 0.0
    %1376 = vmatpush1.msra.mxu0 0.0
    %1377 = vmatprep.subr.mxu0 0.0
    %1378 = vmatpush1.msra.mxu0 0.0
    %1379 = vmatprep.subr.mxu0 0.0
    %1380 = vmatpush1.msra.mxu0 0.0
    %1381 = vmatprep.subr.mxu0 0.0
    %1382 = vmatpush1.msra.mxu0 0.0
    %1383 = vmatprep.subr.mxu0 0.0
    %1384 = vmatpush1.msra.mxu0 0.0
    %1385 = vmatprep.subr.mxu0 0.0
    %1386 = vmatpush1.msra.mxu0 0.0
    %1387 = vmatprep.subr.mxu0 0.0
    %1388 = vmatpush1.msra.mxu0 0.0
    %1389 = vmatprep.subr.mxu0 0.0
    %1390 = vmatpush1.msra.mxu0 0.0
    %1391 = vmatprep.subr.mxu0 0.0
    %1392 = vmatpush1.msra.mxu0 0.0
    %1393 = vmatprep.subr.mxu0 0.0
    %1394 = vmatpush1.msra.mxu0 0.0
    %1395 = vmatprep.subr.mxu0 0.0
    %1396 = vmatpush1.msra.mxu0 0.0
    %1397 = vmatprep.subr.mxu0 0.0
    %1398 = vmatpush1.msra.mxu0 0.0
    %1399 = vmatprep.subr.mxu0 0.0
    %1400 = vmatpush1.msra.mxu0 0.0
    %1401 = vmatprep.subr.mxu0 0.0
    %1402 = vmatpush1.msra.mxu0 0.0
    %1403 = vmatprep.subr.mxu0 0.0
    %1404 = vmatpush1.msra.mxu0 0.0
    %1405 = vmatprep.subr.mxu0 0.0
    %1406 = vmatpush1.msra.mxu0 0.0
    %1407 = vmatprep.mubr.f32.mxu0 0.0
    %1408 = vmatmul.mubr.f32.gmra.mrb[0].mxu0 %v1341
    %v1409 = vpop.f32.mrb[0].mxu0
    %v1410 = vadd.f32 0.0, %v1409
    %v1411 = vpop.f32.mrb[0].mxu0
    %1412 = vdwg.mxu0
    %1413 = vst.msk [vmem:[#allocation10] sm:$0xff] %vm102, %v899
    %1414 = vst.msk [vmem:[#allocation10 + $0x8] sm:$0xff] %vm102, %v972
    %1415 = vst.msk [vmem:[#allocation10 + $0x10] sm:$0xff] %vm102, %v1045
    %1416 = vst.msk [vmem:[#allocation10 + $0x18] sm:$0xff] %vm102, %v1118
    %1417 = vst.msk [vmem:[#allocation10 + $0x20] sm:$0xff] %vm102, %v1191
    %1418 = vst.msk [vmem:[#allocation10 + $0x28] sm:$0xff] %vm102, %v1264
    %1419 = vst.msk [vmem:[#allocation10 + $0x30] sm:$0xff] %vm102, %v1337
    %1420 = vst.msk [vmem:[#allocation10 + $0x38] sm:$0xff] %vm102, %v1410
    // Predicated region
    $region34: #{tpu_custom_call.1} parent=1 // pred_check
      _
    $region35: #{tpu_custom_call.1} parent=1 // pred_check_branch
      %1422 = sbr.rel (0) target = $region37
    $region36: #{tpu_custom_call.1} parent=1 // pred_region
      %s1424 = ssub.s32 1024, 1024
      %1425 = vsyncadd [#allocation4], %s1424
      %s1426 = sshll.u32 [#allocation10], 4
      %s1427 = int_to_ptr.vmem [resolvable:$true] %s1426
      %1432 = dma.vmem_to_hbm [thread:$0]  %s1427, 1024, %s4, [#allocation4], 128, 128, 8
    $region37: #{tpu_custom_call.1} parent=1 // pred_fallthru
      _
    // Predicated region
    $region38: #{tpu_custom_call.1} parent=1 // pred_check
      _
    $region39: #{tpu_custom_call.1} parent=1 // pred_check_branch
      %1434 = sbr.rel (0) target = $region41
    $region40: #{tpu_custom_call.1} parent=1 // pred_region
      %s1436 = ssub.s32 1024, 1024
      %1437 = vsyncadd [#allocation12], %s1436
      %s1438 = sshll.u32 [#allocation11], 4
      %s1439 = int_to_ptr.vmem [resolvable:$true] %s1438
      %1444 = dma.vmem_to_hbm [thread:$0]  %s1439, 1024, %s5, [#allocation12], 128, 128, 8
    $region41: #{tpu_custom_call.1} parent=1 // pred_fallthru
      _
    // Predicated region
    $region42: #{tpu_custom_call.1} parent=1 // pred_check
      _
    $region43: #{tpu_custom_call.1} parent=1 // pred_check_branch
      %1446 = sbr.rel (0) target = $region45
    $region44: #{tpu_custom_call.1} parent=1 // pred_region
      %1447 = dma.done [#allocation4], 1024
    $region45: #{tpu_custom_call.1} parent=1 // pred_fallthru
      _
    // Predicated region
    $region46: #{tpu_custom_call.1} parent=1 // pred_check
      _
    $region47: #{tpu_custom_call.1} parent=1 // pred_check_branch
      %1449 = sbr.rel (0) target = $region49
    $region48: #{tpu_custom_call.1} parent=1 // pred_region
      %1450 = dma.done [#allocation12], 1024
    $region49: #{tpu_custom_call.1} parent=1 // pred_fallthru
      _
    %1451 = vsyncpa [#allocation3], 1
    %1452 = vsyncpa [#allocation6], 1
    %1453 = vsyncpa [#allocation9], 1
    %1454 = vsyncpa [#allocation4], 1
    %1455 = vsyncpa [#allocation12], 1

</llo_original>
